<compile_context>
chip_gen: v5e
topology: v5e:2x2
jax: 0.10.0
libtpu: 0.0.40
codegen_flags: <defaults>
</compile_context>

<pallas_src>
import functools

import jax
import jax.numpy as jnp
from jax.experimental import pallas as pl
from jax.experimental.pallas import tpu as pltpu


def _neg_loss_kernel(inp_ref, outp_ref, noise_ref, loss_ref, acc_ref, *,
                     n_valid, inv_batch, num_sampled, embed_size,
                     tiles_per_core):
    c = pl.program_id(0)          # partial-sum / core index ("parallel")
    i = pl.program_id(1)          # row-tile index within the partial ("arbitrary")

    @pl.when(i == 0)
    def _init():
        acc_ref[...] = jnp.zeros_like(acc_ref)

    tile_n = inp_ref.shape[0]
    e = embed_size

    inp = inp_ref[...].astype(jnp.float32)       # [tile_n, E]
    outp = outp_ref[...].astype(jnp.float32)     # [tile_n, E]
    # Dominant stream arrives as bf16 (lane-dense [tile_n, S*E]); widen once.
    noise = noise_ref[...].astype(jnp.float32)   # [tile_n, S*E]

    ones_e = jnp.ones((e, 1), jnp.float32)

    def log_sigmoid(x):
        # stable: never overflows, no divide (exp/log go to the EUP slot)
        return jnp.minimum(x, 0.0) - jnp.log(1.0 + jnp.exp(-jnp.abs(x)))

    # ---- positive logits: <inp_n, outp_n>, lane reduction on the MXU --------
    d_pos = jnp.dot(inp * outp, ones_e, preferred_element_type=jnp.float32)
    per_row = log_sigmoid(d_pos)                                  # [tile_n, 1]

    # ---- negative logits, one E-wide lane segment at a time (static unroll) -
    # torch does out_embed(noise).neg() before the bmm -> sign flip is here.
    for s in range(num_sampled):
        seg = jax.lax.slice_in_dim(noise, s * e, (s + 1) * e, axis=1)
        d_s = jnp.dot(seg * inp, ones_e, preferred_element_type=jnp.float32)
        per_row = per_row + log_sigmoid(-d_s)                     # [tile_n, 1]

    # Mask rows added when padding N up to num_partials*tiles_per_core*tile_n.
    row = (c * tiles_per_core + i) * tile_n + jax.lax.broadcasted_iota(
        jnp.int32, (tile_n, 1), 0)
    per_row = jnp.where(row < n_valid, per_row, 0.0)

    acc_ref[...] += per_row      # [tile_n, 1]; cross-sublane reduce deferred

    @pl.when(i == pl.num_programs(1) - 1)
    def _finalize():
        total = jnp.sum(acc_ref[...], keepdims=True)              # [1, 1]
        loss_ref[...] = ((-inv_batch) * total).reshape(1, 1, 1)


def _vmem_capacity_bytes():
    try:
        info = pltpu.get_tpu_info()
        cap = getattr(info, "vmem_capacity_bytes", None)
        if cap:
            return int(cap)
    except Exception:
        pass
    return 64 * 1024 * 1024   # conservative fallback (v7x per-core physical)


def _choose_tile_n(n_rows, num_sampled, embed, budget_bytes):
    # Per-row VMEM bytes:
    #   double-buffered input blocks: 2 * (inp f32 + outp f32 + noise bf16)
    #   in-kernel f32 widening of the noise block + a few [tile_n, E] f32 temps
    #   [tile_n, 1] f32 accumulator (lane-padded to 128)
    row_bytes = 2 * (4 * embed + 4 * embed + 2 * num_sampled * embed)
    row_bytes += 4 * num_sampled * embed + 8 * 4 * embed + 512
    cap = (budget_bytes // row_bytes) // 16 * 16    # multiple of 16 (bf16 sublane pack)
    cap = max(16, min(cap, 2048))
    n_pad16 = -(-n_rows // 16) * 16
    return min(cap, n_pad16)


def neg_loss_pallas(in_weight, out_weight, input_labels, out_labels, noise_idx):
    """Replicates NEG_loss.forward.

    in_weight / out_weight : [num_classes, embed_size] f32
    input_labels           : [batch] int32
    out_labels             : [batch, window] int32
    noise_idx              : [batch*window, num_sampled] int32
    """
    batch_size, window_size = out_labels.shape
    n = batch_size * window_size
    num_sampled = noise_idx.shape[-1]
    embed = in_weight.shape[1]

    vmem_cap = _vmem_capacity_bytes()
    vmem_limit = int(min(max(32 * 1024 * 1024, 0.5 * vmem_cap),
                         96 * 1024 * 1024))
    tile_n = _choose_tile_n(n, num_sampled, embed, int(0.7 * vmem_limit))

    num_tiles = -(-n // tile_n)
    num_partials = 2 if num_tiles >= 2 else 1   # v7x: 2 TCs; harmless on 1-TC chips
    tiles_per_core = -(-num_tiles // num_partials)
    n_pad = num_partials * tiles_per_core * tile_n

    # --- gather glue in plain JAX (mirrors torch's repeat(1,W).view(-1)) -----
    # Pad the *small int32 index arrays* (not the gathered tensors) so no extra
    # HBM pass is spent padding the dominant [N, S*E] noise stream.
    tiled_in = jnp.tile(input_labels, window_size)           # [N]
    out_flat = out_labels.reshape(-1)                         # [N]
    noise_flat = noise_idx.reshape(n, num_sampled)            # [N, S]
    pad = n_pad - n
    if pad:
        tiled_in = jnp.pad(tiled_in, (0, pad))
        out_flat = jnp.pad(out_flat, (0, pad))
        noise_flat = jnp.pad(noise_flat, ((0, pad), (0, 0)))

    inp = jnp.take(in_weight, tiled_in, axis=0).astype(jnp.float32)    # [n_pad, E]
    outp = jnp.take(out_weight, out_flat, axis=0).astype(jnp.float32)  # [n_pad, E]
    # Dominant stream travels HBM->VMEM as bf16, lane-dense [n_pad, S*E],
    # NOT negated here (the sign flip is free in-kernel).
    noise = jnp.take(out_weight.astype(jnp.bfloat16), noise_flat.reshape(-1),
                     axis=0).reshape(n_pad, num_sampled * embed)

    kernel = functools.partial(
        _neg_loss_kernel,
        n_valid=n,
        inv_batch=1.0 / batch_size,
        num_sampled=num_sampled,
        embed_size=embed,
        tiles_per_core=tiles_per_core,
    )

    row_map = lambda c, i: (c * tiles_per_core + i, 0)

    partials = pl.pallas_call(
        kernel,
        out_shape=jax.ShapeDtypeStruct((num_partials, 1, 1), jnp.float32),
        grid_spec=pltpu.PrefetchScalarGridSpec(
            num_scalar_prefetch=0,
            grid=(num_partials, tiles_per_core),
            in_specs=[
                pl.BlockSpec((tile_n, embed), row_map),
                pl.BlockSpec((tile_n, embed), row_map),
                pl.BlockSpec((tile_n, num_sampled * embed), row_map),
            ],
            out_specs=pl.BlockSpec((1, 1, 1), lambda c, i: (c, 0, 0)),
            scratch_shapes=[pltpu.VMEM((tile_n, 1), jnp.float32)],
        ),
        compiler_params=pltpu.CompilerParams(
            dimension_semantics=("parallel", "arbitrary"),
            vmem_limit_bytes=vmem_limit,
        ),
    )(inp, outp, noise)
    # Each per-core partial already carries the -1/batch scale; just add them.
    return jnp.sum(partials)


def neg_loss_reference(in_weight, out_weight, input_labels, out_labels,
                       noise_idx, noise_dtype=jnp.float32):
    batch_size, window_size = out_labels.shape
    n = batch_size * window_size
    tiled_in = jnp.tile(input_labels, window_size)
    inp = jnp.take(in_weight, tiled_in, axis=0)
    outp = jnp.take(out_weight, out_labels.reshape(-1), axis=0)
    noise_w = out_weight.astype(noise_dtype).astype(jnp.float32)
    noise = -jnp.take(noise_w, noise_idx.reshape(n, -1), axis=0)
    log_target = jnp.log(jax.nn.sigmoid(jnp.sum(inp * outp, axis=1)))
    d_neg = jnp.einsum("nse,ne->ns", noise, inp)
    sum_log_sampled = jnp.sum(jnp.log(jax.nn.sigmoid(d_neg)), axis=1)
    return -jnp.sum(log_target + sum_log_sampled) / batch_size


if __name__ == "__main__":
    num_classes = 50
    embed_size = 32
    batch = 2
    window = 8
    num_sampled = 4

    key = jax.random.PRNGKey(0)
    k_in, k_out, k_il, k_ol, k_noise = jax.random.split(key, 5)

    # Parameters: uniform(-1, 1), same shapes as the torch module's embeddings.
    in_weight = jax.random.uniform(k_in, (num_classes, embed_size),
                                   minval=-1.0, maxval=1.0, dtype=jnp.float32)
    out_weight = jax.random.uniform(k_out, (num_classes, embed_size),
                                    minval=-1.0, maxval=1.0, dtype=jnp.float32)

    input_labels = jax.random.randint(k_il, (batch,), 0, num_classes, dtype=jnp.int32)
    out_labels = jax.random.randint(k_ol, (batch, window), 0, num_classes, dtype=jnp.int32)
    # torch: Tensor(N, S).uniform_(0, num_classes-1).long()  (truncating cast)
    noise_idx = jax.random.uniform(
        k_noise, (batch * window, num_sampled),
        minval=0.0, maxval=float(num_classes - 1)).astype(jnp.int32)

    loss = neg_loss_pallas(in_weight, out_weight, input_labels, out_labels, noise_idx)
    loss = jax.block_until_ready(loss)

    # Reference with the noise stream rounded to bf16 (what the kernel streams):
    ref_bf16 = neg_loss_reference(in_weight, out_weight, input_labels, out_labels,
                                  noise_idx, noise_dtype=jnp.bfloat16)
    # Full-f32 reference (looser tolerance: kernel streams noise as bf16):
    ref_f32 = neg_loss_reference(in_weight, out_weight, input_labels, out_labels,
                                 noise_idx)
    assert jnp.allclose(loss, ref_bf16, rtol=1e-3, atol=1e-3), (loss, ref_bf16)
    assert jnp.allclose(loss, ref_f32, rtol=3e-2, atol=3e-2), (loss, ref_f32)

    print("KERNEL_OK")
</pallas_src>

<mosaic_0001>
module attributes {stable_mosaic.version = 11 : i64} {
  func.func @_neg_loss_kernel(%arg0: i32, %arg1: i32, %arg2: memref<16x32xf32, #tpu.memory_space<vmem>>, %arg3: memref<16x32xf32, #tpu.memory_space<vmem>>, %arg4: memref<16x128xbf16, #tpu.memory_space<vmem>>, %arg5: memref<1x1x1xf32, #tpu.memory_space<vmem>>, %arg6: memref<16x1xf32, #tpu.memory_space<vmem>>) attributes {dimension_semantics = [#tpu.dimension_semantics<parallel>, #tpu.dimension_semantics<arbitrary>], iteration_bounds = array<i64: 1, 1>, scalar_prefetch = 0 : i64, scratch_operands = 1 : i64, tpu.core_type = #tpu.core_type<tc>, window_params = [{transform_indices = @transform_0, window_bounds = array<i64: 16, 32>}, {transform_indices = @transform_1, window_bounds = array<i64: 16, 32>}, {transform_indices = @transform_2, window_bounds = array<i64: 16, 128>}, {transform_indices = @transform_3, window_bounds = array<i64: 1, 1, 1>}]} {
    %c0_i32 = arith.constant 0 : i32
    %0 = arith.cmpi eq, %arg1, %c0_i32 : i32
    %1 = arith.extui %0 : i1 to i32
    %c0_i32_0 = arith.constant 0 : i32
    %2 = arith.cmpi ne, %1, %c0_i32_0 : i32
    scf.if %2 {
      %cst_38 = arith.constant 0.000000e+00 : f32
      %100 = vector.broadcast %cst_38 : f32 to vector<16x1xf32>
      %c0_39 = arith.constant 0 : index
      %c0_40 = arith.constant 0 : index
      %101 = vector.load %arg6[%c0_39, %c0_40] : memref<16x1xf32, #tpu.memory_space<vmem>>, vector<16x1xf32>
      tpu.vector_store %arg6[%c0_39, %c0_40], %100 {strides = array<i32>} : memref<16x1xf32, #tpu.memory_space<vmem>>, vector<16x1xf32>,
    } else {
    }
    %c0 = arith.constant 0 : index
    %c0_1 = arith.constant 0 : index
    %3 = vector.load %arg2[%c0, %c0_1] : memref<16x32xf32, #tpu.memory_space<vmem>>, vector<16x32xf32>
    %c0_2 = arith.constant 0 : index
    %c0_3 = arith.constant 0 : index
    %4 = vector.load %arg3[%c0_2, %c0_3] : memref<16x32xf32, #tpu.memory_space<vmem>>, vector<16x32xf32>
    %c0_4 = arith.constant 0 : index
    %c0_5 = arith.constant 0 : index
    %5 = vector.load %arg4[%c0_4, %c0_5] : memref<16x128xbf16, #tpu.memory_space<vmem>>, vector<16x128xbf16>
    %6 = arith.extf %5 : vector<16x128xbf16> to vector<16x128xf32>
    %cst = arith.constant 1.000000e+00 : f32
    %7 = vector.broadcast %cst : f32 to vector<32x1xf32>
    %8 = arith.mulf %3, %4 : vector<16x32xf32>
    %cst_6 = arith.constant dense<0.000000e+00> : vector<16x1xf32>
    %9 = tpu.matmul %8, %7, %cst_6 {dimension_numbers = #tpu.dot_dimension_numbers<[1], [0], [0], [1], [0, 0, 1, 1], [], []>} : vector<16x32xf32>, vector<32x1xf32>, vector<16x1xf32> -> vector<16x1xf32>
    %cst_7 = arith.constant 0.000000e+00 : f32
    %10 = vector.broadcast %cst_7 : f32 to vector<16x1xf32>
    %11 = arith.minimumf %9, %10 : vector<16x1xf32>
    %12 = math.absf %9 : vector<16x1xf32>
    %cst_8 = arith.constant 0.000000e+00 : f32
    %13 = vector.broadcast %cst_8 : f32 to vector<16x1xf32>
    %14 = arith.subf %13, %12 : vector<16x1xf32>
    %15 = math.exp %14 : vector<16x1xf32>
    %cst_9 = arith.constant 1.000000e+00 : f32
    %16 = vector.broadcast %cst_9 : f32 to vector<16x1xf32>
    %17 = arith.addf %16, %15 : vector<16x1xf32>
    %18 = math.log %17 : vector<16x1xf32>
    %19 = arith.subf %11, %18 : vector<16x1xf32>
    %20 = vector.extract_strided_slice %6 {offsets = [0, 0], sizes = [16, 32], strides = [1, 1]} : vector<16x128xf32> to vector<16x32xf32>
    %21 = arith.mulf %20, %3 : vector<16x32xf32>
    %cst_10 = arith.constant dense<0.000000e+00> : vector<16x1xf32>
    %22 = tpu.matmul %21, %7, %cst_10 {dimension_numbers = #tpu.dot_dimension_numbers<[1], [0], [0], [1], [0, 0, 1, 1], [], []>} : vector<16x32xf32>, vector<32x1xf32>, vector<16x1xf32> -> vector<16x1xf32>
    %cst_11 = arith.constant 0.000000e+00 : f32
    %23 = vector.broadcast %cst_11 : f32 to vector<16x1xf32>
    %24 = arith.subf %23, %22 : vector<16x1xf32>
    %cst_12 = arith.constant 0.000000e+00 : f32
    %25 = vector.broadcast %cst_12 : f32 to vector<16x1xf32>
    %26 = arith.minimumf %24, %25 : vector<16x1xf32>
    %27 = math.absf %24 : vector<16x1xf32>
    %cst_13 = arith.constant 0.000000e+00 : f32
    %28 = vector.broadcast %cst_13 : f32 to vector<16x1xf32>
    %29 = arith.subf %28, %27 : vector<16x1xf32>
    %30 = math.exp %29 : vector<16x1xf32>
    %cst_14 = arith.constant 1.000000e+00 : f32
    %31 = vector.broadcast %cst_14 : f32 to vector<16x1xf32>
    %32 = arith.addf %31, %30 : vector<16x1xf32>
    %33 = math.log %32 : vector<16x1xf32>
    %34 = arith.subf %26, %33 : vector<16x1xf32>
    %35 = arith.addf %19, %34 : vector<16x1xf32>
    %36 = vector.extract_strided_slice %6 {offsets = [0, 32], sizes = [16, 32], strides = [1, 1]} : vector<16x128xf32> to vector<16x32xf32>
    %37 = arith.mulf %36, %3 : vector<16x32xf32>
    %cst_15 = arith.constant dense<0.000000e+00> : vector<16x1xf32>
    %38 = tpu.matmul %37, %7, %cst_15 {dimension_numbers = #tpu.dot_dimension_numbers<[1], [0], [0], [1], [0, 0, 1, 1], [], []>} : vector<16x32xf32>, vector<32x1xf32>, vector<16x1xf32> -> vector<16x1xf32>
    %cst_16 = arith.constant 0.000000e+00 : f32
    %39 = vector.broadcast %cst_16 : f32 to vector<16x1xf32>
    %40 = arith.subf %39, %38 : vector<16x1xf32>
    %cst_17 = arith.constant 0.000000e+00 : f32
    %41 = vector.broadcast %cst_17 : f32 to vector<16x1xf32>
    %42 = arith.minimumf %40, %41 : vector<16x1xf32>
    %43 = math.absf %40 : vector<16x1xf32>
    %cst_18 = arith.constant 0.000000e+00 : f32
    %44 = vector.broadcast %cst_18 : f32 to vector<16x1xf32>
    %45 = arith.subf %44, %43 : vector<16x1xf32>
    %46 = math.exp %45 : vector<16x1xf32>
    %cst_19 = arith.constant 1.000000e+00 : f32
    %47 = vector.broadcast %cst_19 : f32 to vector<16x1xf32>
    %48 = arith.addf %47, %46 : vector<16x1xf32>
    %49 = math.log %48 : vector<16x1xf32>
    %50 = arith.subf %42, %49 : vector<16x1xf32>
    %51 = arith.addf %35, %50 : vector<16x1xf32>
    %52 = vector.extract_strided_slice %6 {offsets = [0, 64], sizes = [16, 32], strides = [1, 1]} : vector<16x128xf32> to vector<16x32xf32>
    %53 = arith.mulf %52, %3 : vector<16x32xf32>
    %cst_20 = arith.constant dense<0.000000e+00> : vector<16x1xf32>
    %54 = tpu.matmul %53, %7, %cst_20 {dimension_numbers = #tpu.dot_dimension_numbers<[1], [0], [0], [1], [0, 0, 1, 1], [], []>} : vector<16x32xf32>, vector<32x1xf32>, vector<16x1xf32> -> vector<16x1xf32>
    %cst_21 = arith.constant 0.000000e+00 : f32
    %55 = vector.broadcast %cst_21 : f32 to vector<16x1xf32>
    %56 = arith.subf %55, %54 : vector<16x1xf32>
    %cst_22 = arith.constant 0.000000e+00 : f32
    %57 = vector.broadcast %cst_22 : f32 to vector<16x1xf32>
    %58 = arith.minimumf %56, %57 : vector<16x1xf32>
    %59 = math.absf %56 : vector<16x1xf32>
    %cst_23 = arith.constant 0.000000e+00 : f32
    %60 = vector.broadcast %cst_23 : f32 to vector<16x1xf32>
    %61 = arith.subf %60, %59 : vector<16x1xf32>
    %62 = math.exp %61 : vector<16x1xf32>
    %cst_24 = arith.constant 1.000000e+00 : f32
    %63 = vector.broadcast %cst_24 : f32 to vector<16x1xf32>
    %64 = arith.addf %63, %62 : vector<16x1xf32>
    %65 = math.log %64 : vector<16x1xf32>
    %66 = arith.subf %58, %65 : vector<16x1xf32>
    %67 = arith.addf %51, %66 : vector<16x1xf32>
    %68 = vector.extract_strided_slice %6 {offsets = [0, 96], sizes = [16, 32], strides = [1, 1]} : vector<16x128xf32> to vector<16x32xf32>
    %69 = arith.mulf %68, %3 : vector<16x32xf32>
    %cst_25 = arith.constant dense<0.000000e+00> : vector<16x1xf32>
    %70 = tpu.matmul %69, %7, %cst_25 {dimension_numbers = #tpu.dot_dimension_numbers<[1], [0], [0], [1], [0, 0, 1, 1], [], []>} : vector<16x32xf32>, vector<32x1xf32>, vector<16x1xf32> -> vector<16x1xf32>
    %cst_26 = arith.constant 0.000000e+00 : f32
    %71 = vector.broadcast %cst_26 : f32 to vector<16x1xf32>
    %72 = arith.subf %71, %70 : vector<16x1xf32>
    %cst_27 = arith.constant 0.000000e+00 : f32
    %73 = vector.broadcast %cst_27 : f32 to vector<16x1xf32>
    %74 = arith.minimumf %72, %73 : vector<16x1xf32>
    %75 = math.absf %72 : vector<16x1xf32>
    %cst_28 = arith.constant 0.000000e+00 : f32
    %76 = vector.broadcast %cst_28 : f32 to vector<16x1xf32>
    %77 = arith.subf %76, %75 : vector<16x1xf32>
    %78 = math.exp %77 : vector<16x1xf32>
    %cst_29 = arith.constant 1.000000e+00 : f32
    %79 = vector.broadcast %cst_29 : f32 to vector<16x1xf32>
    %80 = arith.addf %79, %78 : vector<16x1xf32>
    %81 = math.log %80 : vector<16x1xf32>
    %82 = arith.subf %74, %81 : vector<16x1xf32>
    %83 = arith.addf %67, %82 : vector<16x1xf32>
    %c1_i32 = arith.constant 1 : i32
    %84 = arith.muli %arg0, %c1_i32 : i32
    %85 = arith.addi %84, %arg1 : i32
    %c16_i32 = arith.constant 16 : i32
    %86 = arith.muli %85, %c16_i32 : i32
    %87 = tpu.iota {dimensions = array<i32: 0>} : vector<16x1xi32>
    %88 = vector.broadcast %86 : i32 to vector<16x1xi32>
    %89 = arith.addi %88, %87 : vector<16x1xi32>
    %c16_i32_30 = arith.constant 16 : i32
    %90 = vector.broadcast %c16_i32_30 : i32 to vector<16x1xi32>
    %91 = arith.cmpi slt, %89, %90 : vector<16x1xi32>
    %cst_31 = arith.constant 0.000000e+00 : f32
    %92 = vector.broadcast %cst_31 : f32 to vector<16x1xf32>
    %93 = arith.select %91, %83, %92 : vector<16x1xi1>, vector<16x1xf32>
    %c0_32 = arith.constant 0 : index
    %c0_33 = arith.constant 0 : index
    %94 = vector.load %arg6[%c0_32, %c0_33] : memref<16x1xf32, #tpu.memory_space<vmem>>, vector<16x1xf32>
    %95 = arith.addf %94, %93 : vector<16x1xf32>
    %c0_34 = arith.constant 0 : index
    %c0_35 = arith.constant 0 : index
    %96 = vector.load %arg6[%c0_34, %c0_35] : memref<16x1xf32, #tpu.memory_space<vmem>>, vector<16x1xf32>
    tpu.vector_store %arg6[%c0_34, %c0_35], %95 {strides = array<i32>} : memref<16x1xf32, #tpu.memory_space<vmem>>, vector<16x1xf32>,
    %c0_i32_36 = arith.constant 0 : i32
    %97 = arith.cmpi eq, %arg1, %c0_i32_36 : i32
    %98 = arith.extui %97 : i1 to i32
    %c0_i32_37 = arith.constant 0 : i32
    %99 = arith.cmpi ne, %98, %c0_i32_37 : i32
    scf.if %99 {
      %c0_38 = arith.constant 0 : index
      %c0_39 = arith.constant 0 : index
      %100 = vector.load %arg6[%c0_38, %c0_39] : memref<16x1xf32, #tpu.memory_space<vmem>>, vector<16x1xf32>
      %101 = vector.shape_cast %100 : vector<16x1xf32> to vector<1x16x1xf32>
      %cst_40 = arith.constant dense<0.000000e+00> : vector<1xf32>
      %102 = vector.multi_reduction <add>, %101, %cst_40 [1, 2] : vector<1x16x1xf32> to vector<1xf32>
      %103 = vector.shape_cast %102 : vector<1xf32> to vector<1x1x1xf32>
      %104 = vector.extract %103[0, 0, 0] : f32 from vector<1x1x1xf32>
      %105 = vector.broadcast %104 : f32 to vector<1x1xf32>
      %cst_41 = arith.constant -5.000000e-01 : f32
      %106 = vector.broadcast %cst_41 : f32 to vector<1x1xf32>
      %107 = arith.mulf %106, %105 : vector<1x1xf32>
      %108 = vector.shape_cast %107 : vector<1x1xf32> to vector<1x1x1xf32>
      %c0_42 = arith.constant 0 : index
      %c0_43 = arith.constant 0 : index
      %c0_44 = arith.constant 0 : index
      %109 = vector.load %arg5[%c0_42, %c0_43, %c0_44] : memref<1x1x1xf32, #tpu.memory_space<vmem>>, vector<1x1x1xf32>
      tpu.vector_store %arg5[%c0_42, %c0_43, %c0_44], %108 {strides = array<i32>} : memref<1x1x1xf32, #tpu.memory_space<vmem>>, vector<1x1x1xf32>,
    } else {
    }
    return
  }
  func.func @transform_0(%arg0: i32, %arg1: i32) -> (i32, i32) {
    %c1_i32 = arith.constant 1 : i32
    %0 = arith.muli %arg0, %c1_i32 : i32
    %1 = arith.addi %0, %arg1 : i32
    %c0_i32 = arith.constant 0 : i32
    %c0_i32_0 = arith.constant 0 : i32
    return %1, %c0_i32 : i32, i32
  }
  func.func @transform_1(%arg0: i32, %arg1: i32) -> (i32, i32) {
    %c1_i32 = arith.constant 1 : i32
    %0 = arith.muli %arg0, %c1_i32 : i32
    %1 = arith.addi %0, %arg1 : i32
    %c0_i32 = arith.constant 0 : i32
    %c0_i32_0 = arith.constant 0 : i32
    return %1, %c0_i32 : i32, i32
  }
  func.func @transform_2(%arg0: i32, %arg1: i32) -> (i32, i32) {
    %c1_i32 = arith.constant 1 : i32
    %0 = arith.muli %arg0, %c1_i32 : i32
    %1 = arith.addi %0, %arg1 : i32
    %c0_i32 = arith.constant 0 : i32
    %c0_i32_0 = arith.constant 0 : i32
    return %1, %c0_i32 : i32, i32
  }
  func.func @transform_3(%arg0: i32, %arg1: i32) -> (i32, i32, i32) {
    %c0_i32 = arith.constant 0 : i32
    %c0_i32_0 = arith.constant 0 : i32
    %c0_i32_1 = arith.constant 0 : i32
    return %arg0, %c0_i32, %c0_i32_0 : i32, i32, i32
  }
}

</mosaic_0001>

<llo_original>
// kernel: tpu_custom_call.1
$region0: #{tpu_custom_call.1}
  #allocation0 [shape = 'u32[]', space=smem, size = 0x4, offset = 0x4, fixed_abs, tag = 'smem constant byte address 0x4 - core index']
  #allocation1 [shape = 'u32[72,128]{1,0:T(1,128)}', space=vmem, size = 0x9000, scoped, tag = 'internal scratch']
  #allocation2 [shape = 'f32[16,1]{1,0:T(8,128)}', space=vmem, size = 0x2000, scoped, tag = 'scratch operand']
  %s0 = inlined_call_operand.hbm [shape: f32[16,32], index: 0, kind: input, shape index: {}]
  %s1 = inlined_call_operand.hbm [shape: f32[16,32], index: 1, kind: input, shape index: {}]
  %s2 = inlined_call_operand.hbm [shape: bf16[16,128], index: 2, kind: input, shape index: {}]
  %s3 = inlined_call_operand.hbm [shape: f32[1,1,1], index: 3, kind: output, shape index: {}]
  %s4 = sld [smem:[#allocation0]]
  $region42: #{tpu_custom_call.1} parent=0
    _
  %s6 = ssub.s32 1, %s4
  %s7 = scalar_select 0, %s6, %s4
  $region1: #{tpu_custom_call.1} parent=0
    #allocation3 [shape = 'u8[8192]{0}', space=vmem, size = 0x2000, scoped, tag = 'input window, operand 0, single buffered']
    #allocation4 [shape = 's32[1]{0}', space=sflag, size = 0x4, scoped, tag = 'scoped memory for tpu_custom_call.1']
    #allocation5 [shape = 's32[1]{0}', space=sflag, size = 0x4, scoped, tag = 'scoped memory for tpu_custom_call.1']
    #allocation6 [shape = 'u8[8192]{0}', space=vmem, size = 0x2000, scoped, tag = 'input window, operand 1, single buffered']
    #allocation7 [shape = 's32[1]{0}', space=sflag, size = 0x4, scoped, tag = 'scoped memory for tpu_custom_call.1']
    #allocation8 [shape = 'u8[4096]{0}', space=vmem, size = 0x1000, scoped, tag = 'input window, operand 2, single buffered']
    #allocation9 [shape = 'u8[512]{0}', space=vmem, size = 0x400, scoped, tag = 'output window, operand 0, single buffered']
    %8 = vsyncpa [#allocation4], 0
    %9 = vsyncpa [#allocation7], 0
    %10 = vsyncpa [#allocation5], 0
    // Predicated region
    $region2: #{tpu_custom_call.1} parent=1 // pred_check
      _
    $region3: #{tpu_custom_call.1} parent=1 // pred_check_branch
      %12 = sbr.rel (0) target = $region5
    $region4: #{tpu_custom_call.1} parent=1 // pred_region
      %s13 = sadd.s32 0, 0
      %s14 = smul.u32 2, %s13
      %16 = vsyncadd [#allocation4], 0
      %s17 = smul.addr %s14, 8
      %s18 = scalar_lea.hbm %s0, %s17
      %s19 = sshll.u32 %s18, 4
      %s20 = int_to_ptr.hbm [resolvable:$true] %s19
      %s21 = sshll.u32 [#allocation3], 4
      %s22 = int_to_ptr.vmem [resolvable:$true] %s21
      %27 = dma.hbm_to_vmem [thread:$0]  %s20, 256, %s22, [#allocation4], 128, 128, 8
    $region5: #{tpu_custom_call.1} parent=1 // pred_fallthru
      _
    // Predicated region
    $region6: #{tpu_custom_call.1} parent=1 // pred_check
      _
    $region7: #{tpu_custom_call.1} parent=1 // pred_check_branch
      %29 = sbr.rel (0) target = $region9
    $region8: #{tpu_custom_call.1} parent=1 // pred_region
      %s30 = sadd.s32 0, 0
      %s31 = smul.u32 2, %s30
      %33 = vsyncadd [#allocation7], 0
      %s34 = smul.addr %s31, 8
      %s35 = scalar_lea.hbm %s1, %s34
      %s36 = sshll.u32 %s35, 4
      %s37 = int_to_ptr.hbm [resolvable:$true] %s36
      %s38 = sshll.u32 [#allocation6], 4
      %s39 = int_to_ptr.vmem [resolvable:$true] %s38
      %44 = dma.hbm_to_vmem [thread:$0]  %s37, 256, %s39, [#allocation7], 128, 128, 8
    $region9: #{tpu_custom_call.1} parent=1 // pred_fallthru
      _
    // Predicated region
    $region10: #{tpu_custom_call.1} parent=1 // pred_check
      _
    $region11: #{tpu_custom_call.1} parent=1 // pred_check_branch
      %46 = sbr.rel (0) target = $region13
    $region12: #{tpu_custom_call.1} parent=1 // pred_region
      %s47 = sadd.s32 0, 0
      %s48 = smul.u32 2, %s47
      %50 = vsyncadd [#allocation7], 0
      %s51 = smul.addr %s48, 4
      %s52 = scalar_lea.hbm %s2, %s51
      %s53 = sshll.u32 %s52, 4
      %s54 = int_to_ptr.hbm [resolvable:$true] %s53
      %s55 = sshll.u32 [#allocation8], 4
      %s56 = int_to_ptr.vmem [resolvable:$true] %s55
      %61 = dma.hbm_to_vmem [thread:$0]  %s54, 128, %s56, [#allocation7], 64, 64, 4
    $region13: #{tpu_custom_call.1} parent=1 // pred_fallthru
      _
    // Predicated region
    $region14: #{tpu_custom_call.1} parent=1 // pred_check
      _
    $region15: #{tpu_custom_call.1} parent=1 // pred_check_branch
      %63 = sbr.rel (0) target = $region17
    $region16: #{tpu_custom_call.1} parent=1 // pred_region
      %65 = dma.done [#allocation4], 256
    $region17: #{tpu_custom_call.1} parent=1 // pred_fallthru
      _
    // Predicated region
    $region18: #{tpu_custom_call.1} parent=1 // pred_check
      _
    $region19: #{tpu_custom_call.1} parent=1 // pred_check_branch
      %67 = sbr.rel (0) target = $region21
    $region20: #{tpu_custom_call.1} parent=1 // pred_region
      %69 = dma.done [#allocation7], 256
    $region21: #{tpu_custom_call.1} parent=1 // pred_fallthru
      _
    // Predicated region
    $region22: #{tpu_custom_call.1} parent=1 // pred_check
      _
    $region23: #{tpu_custom_call.1} parent=1 // pred_check_branch
      %71 = sbr.rel (0) target = $region25
    $region24: #{tpu_custom_call.1} parent=1 // pred_region
      %73 = dma.done [#allocation7], 128
    $region25: #{tpu_custom_call.1} parent=1 // pred_fallthru
      _
    %s74 = sadd.s32 0, 0
    %s75 = smul.u32 2, %s74
    %s76 = sadd.s32 0, 0
    %s77 = smul.u32 2, %s76
    %s78 = sadd.s32 0, 0
    %s79 = smul.u32 2, %s78
    %p80 = scmp.eq.s32.totalorder 0, 0
    // Predicated region
    $region26: #{tpu_custom_call.1} parent=1 // pred_check
      %p81 = pneg %p80
    $region27: #{tpu_custom_call.1} parent=1 // pred_check_branch
      %83 = sbr.rel (%p81) target = $region29
    $region28: #{tpu_custom_call.1} parent=1 // pred_region
      %vm84 = vcmask 7168
      %85 = vst.msk [vmem:[#allocation2] sm:$0xff] %vm84, 0.0
      %86 = vst.msk [vmem:[#allocation2 + $0x8] sm:$0xff] %vm84, 0.0
    $region29: #{tpu_custom_call.1} parent=1 // pred_fallthru
      _
    %v87 = vld [vmem:[#allocation3] sm:$0xff]
    %v88 = vld [vmem:[#allocation3 + $0x8] sm:$0xff]
    %v89 = vld [vmem:[#allocation6] sm:$0xff]
    %v90 = vld [vmem:[#allocation6 + $0x8] sm:$0xff]
    %v91 = vld [vmem:[#allocation8] sm:$0xf]
    %v92 = vld [vmem:[#allocation8 + $0x4] sm:$0xf]
    %v93 = vunpack.c.l.bf16 %v91
    %v94 = vunpack.c.l.bf16 %v92
    %v95 = vmul.f32 %v87, %v89
    %v96 = vmul.f32 %v88, %v90
    %vm97 = vcmask 261120
    %v99 = vsel %vm97, %v95, 0
    %v102 = vsel %vm97, %v96, 0
    %104 = vmatpush.msra.mxu0 0.0
    %105 = vmatpush.msra.mxu0 0.0
    %106 = vmatpush.msra.mxu0 0.0
    %107 = vmatpush.msra.mxu0 0.0
    %108 = vmatpush.msra.mxu0 0.0
    %109 = vmatpush.msra.mxu0 0.0
    %110 = vmatpush.msra.mxu0 0.0
    %111 = vmatpush.msra.mxu0 0.0
    %112 = vmatpush.msra.mxu0 0.0
    %113 = vmatpush.msra.mxu0 0.0
    %114 = vmatpush.msra.mxu0 0.0
    %115 = vmatpush.msra.mxu0 0.0
    %116 = vmatpush.msra.mxu0 1.0
    %117 = vmatpush.msra.mxu0 1.0
    %118 = vmatpush.msra.mxu0 1.0
    %119 = vmatpush.msra.mxu0 1.0
    %120 = vmatmul.f32.gmra.mxu0 %v99
    %v121 = vpop.f32.mrf.mxu0
    %v122 = vadd.f32 0.0, %v121
    %123 = vmatmul.f32.gmra.mxu0 %v102
    %v124 = vpop.f32.mrf.mxu0
    %v125 = vadd.f32 0.0, %v124
    %126 = vdwg.mxu0
    %v127 = vmin.f32 %v122, 0.0
    %v128 = vmin.f32 %v125, 0.0
    %v129 = vand.u32 2147483647, %v122
    %v130 = vand.u32 2147483647, %v125
    %v131 = vsub.f32 0.0, %v129
    %v132 = vsub.f32 0.0, %v130
    %v133 = vmul.f32 %v131, 1.442695
    %v134 = vpow.pop %v133
    %v135 = vmul.f32 %v132, 1.442695
    %v136 = vpow.pop %v135
    %v137 = vadd.f32 %v134, 1.0
    %v138 = vadd.f32 %v136, 1.0
    %v139 = vlog2.pop %v137
    %v140 = vmul.f32 %v139, 0.6931472
    %v141 = vlog2.pop %v138
    %v142 = vmul.f32 %v141, 0.6931472
    %v143 = vsub.f32 %v127, %v140
    %v144 = vsub.f32 %v128, %v142
    %v145 = vmul.f32 %v93, %v87
    %v146 = vmul.f32 %v94, %v88
    %v148 = vsel %vm97, %v145, 0
    %v151 = vsel %vm97, %v146, 0
    %153 = vmatpush.msra.mxu0 0.0
    %154 = vmatpush.msra.mxu0 0.0
    %155 = vmatpush.msra.mxu0 0.0
    %156 = vmatpush.msra.mxu0 0.0
    %157 = vmatpush.msra.mxu0 0.0
    %158 = vmatpush.msra.mxu0 0.0
    %159 = vmatpush.msra.mxu0 0.0
    %160 = vmatpush.msra.mxu0 0.0
    %161 = vmatpush.msra.mxu0 0.0
    %162 = vmatpush.msra.mxu0 0.0
    %163 = vmatpush.msra.mxu0 0.0
    %164 = vmatpush.msra.mxu0 0.0
    %165 = vmatpush.msra.mxu0 1.0
    %166 = vmatpush.msra.mxu0 1.0
    %167 = vmatpush.msra.mxu0 1.0
    %168 = vmatpush.msra.mxu0 1.0
    %169 = vmatmul.f32.gmra.mxu0 %v148
    %v170 = vpop.f32.mrf.mxu0
    %v171 = vadd.f32 0.0, %v170
    %172 = vmatmul.f32.gmra.mxu0 %v151
    %v173 = vpop.f32.mrf.mxu0
    %v174 = vadd.f32 0.0, %v173
    %175 = vdwg.mxu0
    %v176 = vsub.f32 0.0, %v171
    %v177 = vsub.f32 0.0, %v174
    %v178 = vmin.f32 %v176, 0.0
    %v179 = vmin.f32 %v177, 0.0
    %v180 = vand.u32 2147483647, %v176
    %v181 = vand.u32 2147483647, %v177
    %v182 = vsub.f32 0.0, %v180
    %v183 = vsub.f32 0.0, %v181
    %v184 = vmul.f32 %v182, 1.442695
    %v185 = vpow.pop %v184
    %v186 = vmul.f32 %v183, 1.442695
    %v187 = vpow.pop %v186
    %v188 = vadd.f32 %v185, 1.0
    %v189 = vadd.f32 %v187, 1.0
    %v190 = vlog2.pop %v188
    %v191 = vmul.f32 %v190, 0.6931472
    %v192 = vlog2.pop %v189
    %v193 = vmul.f32 %v192, 0.6931472
    %v194 = vsub.f32 %v178, %v191
    %v195 = vsub.f32 %v179, %v193
    %v196 = vadd.f32 %v143, %v194
    %v197 = vadd.f32 %v144, %v195
    %200 = vrot.lane.b32.xlu0 %v87, 32
    %v201 = vpop.permute.xlu0 %200
    %202 = vrot.lane.b32.xlu0 %v88, 32
    %v203 = vpop.permute.xlu0 %202
    %v206 = vmul.f32 %v93, %v201
    %v207 = vmul.f32 %v94, %v203
    %210 = vrot.lane.b32.xlu0 %v206, 96
    %v211 = vpop.permute.xlu0 %210
    %212 = vrot.lane.b32.xlu0 %v207, 96
    %v213 = vpop.permute.xlu0 %212
    %v214 = vsel %vm97, %v211, 0
    %v216 = vsel %vm97, %v213, 0
    %218 = vmatpush.msra.mxu0 0.0
    %219 = vmatpush.msra.mxu0 0.0
    %220 = vmatpush.msra.mxu0 0.0
    %221 = vmatpush.msra.mxu0 0.0
    %222 = vmatpush.msra.mxu0 0.0
    %223 = vmatpush.msra.mxu0 0.0
    %224 = vmatpush.msra.mxu0 0.0
    %225 = vmatpush.msra.mxu0 0.0
    %226 = vmatpush.msra.mxu0 0.0
    %227 = vmatpush.msra.mxu0 0.0
    %228 = vmatpush.msra.mxu0 0.0
    %229 = vmatpush.msra.mxu0 0.0
    %230 = vmatpush.msra.mxu0 1.0
    %231 = vmatpush.msra.mxu0 1.0
    %232 = vmatpush.msra.mxu0 1.0
    %233 = vmatpush.msra.mxu0 1.0
    %234 = vmatmul.f32.gmra.mxu0 %v214
    %v235 = vpop.f32.mrf.mxu0
    %v236 = vadd.f32 0.0, %v235
    %237 = vmatmul.f32.gmra.mxu0 %v216
    %v238 = vpop.f32.mrf.mxu0
    %v239 = vadd.f32 0.0, %v238
    %240 = vdwg.mxu0
    %v241 = vsub.f32 0.0, %v236
    %v242 = vsub.f32 0.0, %v239
    %v243 = vmin.f32 %v241, 0.0
    %v244 = vmin.f32 %v242, 0.0
    %v245 = vand.u32 2147483647, %v241
    %v246 = vand.u32 2147483647, %v242
    %v247 = vsub.f32 0.0, %v245
    %v248 = vsub.f32 0.0, %v246
    %v249 = vmul.f32 %v247, 1.442695
    %v250 = vpow.pop %v249
    %v251 = vmul.f32 %v248, 1.442695
    %v252 = vpow.pop %v251
    %v253 = vadd.f32 %v250, 1.0
    %v254 = vadd.f32 %v252, 1.0
    %v255 = vlog2.pop %v253
    %v256 = vmul.f32 %v255, 0.6931472
    %v257 = vlog2.pop %v254
    %v258 = vmul.f32 %v257, 0.6931472
    %v259 = vsub.f32 %v243, %v256
    %v260 = vsub.f32 %v244, %v258
    %v261 = vadd.f32 %v196, %v259
    %v262 = vadd.f32 %v197, %v260
    %263 = vrot.lane.b32.xlu0 %v87, 64
    %v264 = vpop.permute.xlu0 %263
    %265 = vrot.lane.b32.xlu0 %v88, 64
    %v266 = vpop.permute.xlu0 %265
    %v269 = vmul.f32 %v93, %v264
    %v270 = vmul.f32 %v94, %v266
    %273 = vrot.lane.b32.xlu0 %v269, 64
    %v274 = vpop.permute.xlu0 %273
    %275 = vrot.lane.b32.xlu0 %v270, 64
    %v276 = vpop.permute.xlu0 %275
    %v277 = vsel %vm97, %v274, 0
    %v279 = vsel %vm97, %v276, 0
    %281 = vmatpush.msra.mxu0 0.0
    %282 = vmatpush.msra.mxu0 0.0
    %283 = vmatpush.msra.mxu0 0.0
    %284 = vmatpush.msra.mxu0 0.0
    %285 = vmatpush.msra.mxu0 0.0
    %286 = vmatpush.msra.mxu0 0.0
    %287 = vmatpush.msra.mxu0 0.0
    %288 = vmatpush.msra.mxu0 0.0
    %289 = vmatpush.msra.mxu0 0.0
    %290 = vmatpush.msra.mxu0 0.0
    %291 = vmatpush.msra.mxu0 0.0
    %292 = vmatpush.msra.mxu0 0.0
    %293 = vmatpush.msra.mxu0 1.0
    %294 = vmatpush.msra.mxu0 1.0
    %295 = vmatpush.msra.mxu0 1.0
    %296 = vmatpush.msra.mxu0 1.0
    %297 = vmatmul.f32.gmra.mxu0 %v277
    %v298 = vpop.f32.mrf.mxu0
    %v299 = vadd.f32 0.0, %v298
    %300 = vmatmul.f32.gmra.mxu0 %v279
    %v301 = vpop.f32.mrf.mxu0
    %v302 = vadd.f32 0.0, %v301
    %303 = vdwg.mxu0
    %v304 = vsub.f32 0.0, %v299
    %v305 = vsub.f32 0.0, %v302
    %v306 = vmin.f32 %v304, 0.0
    %v307 = vmin.f32 %v305, 0.0
    %v308 = vand.u32 2147483647, %v304
    %v309 = vand.u32 2147483647, %v305
    %v310 = vsub.f32 0.0, %v308
    %v311 = vsub.f32 0.0, %v309
    %v312 = vmul.f32 %v310, 1.442695
    %v313 = vpow.pop %v312
    %v314 = vmul.f32 %v311, 1.442695
    %v315 = vpow.pop %v314
    %v316 = vadd.f32 %v313, 1.0
    %v317 = vadd.f32 %v315, 1.0
    %v318 = vlog2.pop %v316
    %v319 = vmul.f32 %v318, 0.6931472
    %v320 = vlog2.pop %v317
    %v321 = vmul.f32 %v320, 0.6931472
    %v322 = vsub.f32 %v306, %v319
    %v323 = vsub.f32 %v307, %v321
    %v324 = vadd.f32 %v261, %v322
    %v325 = vadd.f32 %v262, %v323
    %326 = vrot.lane.b32.xlu0 %v87, 96
    %v327 = vpop.permute.xlu0 %326
    %328 = vrot.lane.b32.xlu0 %v88, 96
    %v329 = vpop.permute.xlu0 %328
    %v332 = vmul.f32 %v93, %v327
    %v333 = vmul.f32 %v94, %v329
    %336 = vrot.lane.b32.xlu0 %v332, 32
    %v337 = vpop.permute.xlu0 %336
    %338 = vrot.lane.b32.xlu0 %v333, 32
    %v339 = vpop.permute.xlu0 %338
    %v340 = vsel %vm97, %v337, 0
    %v342 = vsel %vm97, %v339, 0
    %344 = vmatpush.msra.mxu0 0.0
    %345 = vmatpush.msra.mxu0 0.0
    %346 = vmatpush.msra.mxu0 0.0
    %347 = vmatpush.msra.mxu0 0.0
    %348 = vmatpush.msra.mxu0 0.0
    %349 = vmatpush.msra.mxu0 0.0
    %350 = vmatpush.msra.mxu0 0.0
    %351 = vmatpush.msra.mxu0 0.0
    %352 = vmatpush.msra.mxu0 0.0
    %353 = vmatpush.msra.mxu0 0.0
    %354 = vmatpush.msra.mxu0 0.0
    %355 = vmatpush.msra.mxu0 0.0
    %356 = vmatpush.msra.mxu0 1.0
    %357 = vmatpush.msra.mxu0 1.0
    %358 = vmatpush.msra.mxu0 1.0
    %359 = vmatpush.msra.mxu0 1.0
    %360 = vmatmul.f32.gmra.mxu0 %v340
    %v361 = vpop.f32.mrf.mxu0
    %v362 = vadd.f32 0.0, %v361
    %363 = vmatmul.f32.gmra.mxu0 %v342
    %v364 = vpop.f32.mrf.mxu0
    %v365 = vadd.f32 0.0, %v364
    %366 = vdwg.mxu0
    %v367 = vsub.f32 0.0, %v362
    %v368 = vsub.f32 0.0, %v365
    %v369 = vmin.f32 %v367, 0.0
    %v370 = vmin.f32 %v368, 0.0
    %v371 = vand.u32 2147483647, %v367
    %v372 = vand.u32 2147483647, %v368
    %v373 = vsub.f32 0.0, %v371
    %v374 = vsub.f32 0.0, %v372
    %v375 = vmul.f32 %v373, 1.442695
    %v376 = vpow.pop %v375
    %v377 = vmul.f32 %v374, 1.442695
    %v378 = vpow.pop %v377
    %v379 = vadd.f32 %v376, 1.0
    %v380 = vadd.f32 %v378, 1.0
    %v381 = vlog2.pop %v379
    %v382 = vmul.f32 %v381, 0.6931472
    %v383 = vlog2.pop %v380
    %v384 = vmul.f32 %v383, 0.6931472
    %v385 = vsub.f32 %v369, %v382
    %v386 = vsub.f32 %v370, %v384
    %v387 = vadd.f32 %v324, %v385
    %v388 = vadd.f32 %v325, %v386
    %s389 = sadd.s32 0, 0
    %s390 = smul.u32 %s389, 16
    %v391 = vlaneseq
    %v392 = vshrl.u32 %v391, 7
    %v393 = vadd.s32 %v392, 8
    %v394 = vstv %s390
    %v395 = vadd.s32 %v394, %v392
    %v396 = vadd.s32 %v394, %v393
    %vm397 = vcmp.lt.s32.totalorder %v395, 16
    %vm398 = vcmp.lt.s32.totalorder %v396, 16
    %v399 = vsel %vm397, %v387, 0.0
    %v400 = vsel %vm398, %v388, 0.0
    %v401 = vld [vmem:[#allocation2] sm:$0xff]
    %v402 = vld [vmem:[#allocation2 + $0x8] sm:$0xff]
    %v403 = vadd.f32 %v401, %v399
    %v404 = vadd.f32 %v402, %v400
    %vm405 = vcmask 7168
    %406 = vst.msk [vmem:[#allocation2] sm:$0xff] %vm405, %v403
    %407 = vst.msk [vmem:[#allocation2 + $0x8] sm:$0xff] %vm405, %v404
    // Predicated region
    $region30: #{tpu_custom_call.1} parent=1 // pred_check
      %p408 = pneg %p80
    $region31: #{tpu_custom_call.1} parent=1 // pred_check_branch
      %410 = sbr.rel (%p408) target = $region33
    $region32: #{tpu_custom_call.1} parent=1 // pred_region
      %v411 = vld [vmem:[#allocation2] sm:$0xff]
      %v412 = vld [vmem:[#allocation2 + $0x8] sm:$0xff]
      %v413 = vsel %vm405, %v411, 0.0
      %v414 = vsel %vm405, %v412, 0.0
      %v415 = vadd.f32 %v413, %v414
      %416 = vadd.xlane.f32.xlu0 %v415
      %v417 = vpop.xlane.xlu0 %416
      %v418 = vrot.slane %v417, 4
      %v419 = vadd.f32 %v417, %v418
      %v420 = vrot.slane %v419, 2
      %v421 = vadd.f32 %v419, %v420
      %v422 = vrot.slane %v421, 1
      %v423 = vadd.f32 %v421, %v422
      %s424 = vtos %v423
      %v425 = vstv %s424
      %v426 = vmul.f32 %v425, -0.5
      %vm427 = vcmask 0
      %428 = vst.msk [vmem:[#allocation9] sm:$0x1] %vm427, %v426
    $region33: #{tpu_custom_call.1} parent=1 // pred_fallthru
      _
    // Predicated region
    $region34: #{tpu_custom_call.1} parent=1 // pred_check
      _
    $region35: #{tpu_custom_call.1} parent=1 // pred_check_branch
      %430 = sbr.rel (0) target = $region37
    $region36: #{tpu_custom_call.1} parent=1 // pred_region
      %432 = vsyncadd [#allocation5], 0
      %s434 = sshll.u32 [#allocation9], 4
      %s435 = int_to_ptr.vmem [resolvable:$true] %s434
      %s436 = sshll.u32 %s3, 4
      %s437 = int_to_ptr.hbm [resolvable:$true] %s436
      %439 = dma.vmem_to_hbm [thread:$0]  %s435, 16, %s437, [#allocation5]
    $region37: #{tpu_custom_call.1} parent=1 // pred_fallthru
      _
    // Predicated region
    $region38: #{tpu_custom_call.1} parent=1 // pred_check
      _
    $region39: #{tpu_custom_call.1} parent=1 // pred_check_branch
      %441 = sbr.rel (0) target = $region41
    $region40: #{tpu_custom_call.1} parent=1 // pred_region
      %443 = dma.done [#allocation5], 16
    $region41: #{tpu_custom_call.1} parent=1 // pred_fallthru
      _
    %444 = vsyncpa [#allocation4], 1
    %445 = vsyncpa [#allocation7], 1
    %446 = vsyncpa [#allocation5], 1

</llo_original>
